<compile_context>
chip_gen: v7x
topology: tpu7x:2x2x1
jax: 0.10.0
libtpu: 0.0.40
codegen_flags: <defaults>
</compile_context>

<pallas_src>
import functools

import jax
import jax.numpy as jnp
from jax.experimental import pallas as pl
from jax.experimental.pallas import tpu as pltpu


def _masked_ce_kernel(lens_ref, x_ref, tgt_ref, out_ref, acc_ref,
                      *, tiles_per_chunk, compute_dtype, exact_ties):
    """One (batch b, time-chunk c, time-tile ti) grid step.

    lens_ref : SMEM (B,)        int32   scalar-prefetched sequence lengths
    x_ref    : VMEM (TILE_T, C) native  logits tile
    tgt_ref  : VMEM (TILE_T, 1) int32   target class per row
    out_ref  : VMEM (8, 128)    f32     per-(batch, chunk) result block
    acc_ref  : VMEM (8, 128)    f32     scratch accumulator (resident over ti)
               sublane 0 = sum(loss*mask), 1 = sum(mask),
               sublane 2 = sum(wrong*mask), 3 = sum(correct*mask)
    """
    bi = pl.program_id(0)
    ci = pl.program_id(1)
    ti = pl.program_id(2)

    @pl.when(ti == 0)
    def _init():
        acc_ref[...] = jnp.zeros_like(acc_ref)

    # Elementwise math in compute_dtype (bf16 on v6e/v7x when input is bf16);
    # DMA stays in the native dtype.
    x = x_ref[...].astype(compute_dtype)
    tgt = tgt_ref[...]                           # (TILE_T, 1) int32
    tile_t, c = x.shape

    # ---- sequence mask rebuilt from scalar-prefetched lengths ----
    length = lens_ref[bi]
    g_tile = ci * tiles_per_chunk + ti           # un-clamped global time-tile index
    row_ids = jax.lax.broadcasted_iota(jnp.int32, (tile_t, 1), 0)
    tpos = g_tile * tile_t + row_ids             # global time position of each row
    valid = tpos < length                        # masks partial / clamped / padded rows

    # ---- numerically stable cross entropy: lse(logits) - logits[target] ----
    col_ids = jax.lax.broadcasted_iota(jnp.int32, (tile_t, c), 1)
    row_max = jnp.max(x, axis=-1, keepdims=True)
    e = jnp.exp(x - row_max)
    # accumulate sum-exp, log and loss in f32 even on the bf16 path
    sum_e = jnp.sum(e.astype(jnp.float32), axis=-1, keepdims=True)
    lse = row_max.astype(jnp.float32) + jnp.log(sum_e)

    is_tgt = col_ids == tgt
    # exactly one non-zero term per row -> exact even in bf16
    picked_c = jnp.sum(jnp.where(is_tgt, x, jnp.zeros_like(x)),
                       axis=-1, keepdims=True)
    losses = lse - picked_c.astype(jnp.float32)  # (TILE_T, 1) f32

    # ---- argmax prediction correctness ----
    if exact_ties:
        # first-max tie-break, matches torch.max exactly
        idx_if_max = jnp.where(x == row_max, col_ids, c)
        pred = jnp.min(idx_if_max, axis=-1, keepdims=True)
        correct = pred == tgt
    else:
        # cheaper: drops one compare/select + one min-reduce; differs only when
        # a row has duplicated maxima
        correct = picked_c == row_max

    # ---- masked partial sums (NaN-safe: where, not multiply-by-zero) ----
    loss_sum = jnp.sum(jnp.where(valid, losses, 0.0), keepdims=True)   # (1, 1)
    mask_sum = jnp.sum(valid.astype(jnp.float32), keepdims=True)
    t_sum = jnp.sum(jnp.where(valid & correct, 1.0, 0.0), keepdims=True)
    f_sum = mask_sum - t_sum

    # pack the 4 scalars into the lane-dense (8, 128) accumulator tile
    sub = jax.lax.broadcasted_iota(jnp.int32, (8, 128), 0)
    partial = jnp.where(sub == 0, loss_sum,
              jnp.where(sub == 1, mask_sum,
              jnp.where(sub == 2, f_sum,
              jnp.where(sub == 3, t_sum, 0.0))))
    acc_ref[...] += partial

    # write the output block once per (batch, chunk)
    @pl.when(ti == pl.num_programs(2) - 1)
    def _finalize():
        out_ref[...] = acc_ref[...]


def _choose_time_tile(t, c, in_itemsize, compute_itemsize,
                      target_bytes, vmem_budget_bytes):
    """Rows per time-tile, sized against the *real* VMEM footprint.

    Per row:
      2 * C * in_itemsize          double-buffered native logits
      2 * 512                      double-buffered (tile_t,1) int32 targets
                                   (padded to (8,128) tiles -> 512 B/row)
      C * (12 + 3*compute_bytes)   in-kernel intermediates (col_ids + idx_if_max
                                   iotas, shifted logits, exp, f32 sum-exp copy)
    """
    logits_row = c * in_itemsize
    tgt_row = 512
    inter_row = c * (12 + 3 * compute_itemsize)
    per_row = 2 * (logits_row + tgt_row) + inter_row

    rows_budget = max(8, int(vmem_budget_bytes * 0.75) // per_row)
    rows_target = max(8, target_bytes // max(1, logits_row))
    rows = max(8, (min(rows_budget, rows_target) // 8) * 8)
    return t if rows >= t else rows


@functools.partial(
    jax.jit,
    static_argnames=("tile_t", "target_bytes", "n_chunks",
                     "use_bf16_compute", "exact_ties", "vmem_budget_bytes"))
def masked_cross_entropy_loss(logits, target, lengths, *,
                              tile_t=None,
                              target_bytes=8 << 20,
                              n_chunks=None,
                              use_bf16_compute=None,
                              exact_ties=True,
                              vmem_budget_bytes=48 << 20):
    """logits: (B, T, C) float; target: (B, T) int; lengths: (B,) int.

    Returns (mean_masked_loss, f, t) matching the PyTorch module:
      mean_masked_loss = sum(ce_loss * mask) / sum(mask)
      f = #masked positions with argmax != target
      t = #masked positions with argmax == target
    """
    b, t, c = logits.shape
    in_itemsize = jnp.dtype(logits.dtype).itemsize

    if use_bf16_compute is None:
        # bf16 elementwise math only when the input already is bf16 (v6e/v7x win,
        # pass use_bf16_compute=False on v5e: no bf16 VALU/EUP there).
        use_bf16_compute = jnp.dtype(logits.dtype) == jnp.dtype(jnp.bfloat16)
    compute_dtype = jnp.bfloat16 if use_bf16_compute else jnp.float32
    compute_itemsize = jnp.dtype(compute_dtype).itemsize

    if tile_t is None:
        tile_t = _choose_time_tile(t, c, in_itemsize, compute_itemsize,
                                   target_bytes, vmem_budget_bytes)
    num_ti = pl.cdiv(t, tile_t)

    # Second parallel axis: give v7x's two TensorCores independent work even
    # when B == 1 by splitting the time-tile range into chunks.
    if n_chunks is None:
        n_chunks = 1 if b >= 2 else min(2, num_ti)
    n_chunks = max(1, min(n_chunks, num_ti))
    tiles_per_chunk = pl.cdiv(num_ti, n_chunks)

    tgt3d = target.astype(jnp.int32).reshape(b, t, 1)
    lengths = jnp.minimum(lengths.astype(jnp.int32), t)   # safety clamp

    # Clamp the global tile index so the padded (chunk, tile) range never DMAs
    # out of bounds; the clamped duplicate tile is fully masked in-kernel.
    def in_map(bi, ci, ti, lens):
        return (bi, jnp.minimum(ci * tiles_per_chunk + ti, num_ti - 1), 0)

    def out_map(bi, ci, ti, lens):
        return (bi, ci, 0, 0)

    kernel = functools.partial(_masked_ce_kernel,
                               tiles_per_chunk=tiles_per_chunk,
                               compute_dtype=compute_dtype,
                               exact_ties=exact_ties)

    cost = pl.CostEstimate(
        flops=8 * b * t * c,
        transcendentals=b * t * c,
        bytes_accessed=(b * t * c * in_itemsize + b * t * 4 + b * 4
                        + b * n_chunks * 8 * 128 * 4),
    )

    grid_spec = pltpu.PrefetchScalarGridSpec(
        num_scalar_prefetch=1,                          # lengths -> SMEM
        grid=(b, n_chunks, tiles_per_chunk),
        in_specs=[
            pl.BlockSpec((None, tile_t, c), in_map),    # logits, native dtype
            pl.BlockSpec((None, tile_t, 1), in_map),    # targets (int32)
        ],
        out_specs=pl.BlockSpec((None, None, 8, 128), out_map),
        scratch_shapes=[pltpu.VMEM((8, 128), jnp.float32)],
    )

    acc = pl.pallas_call(
        kernel,
        out_shape=jax.ShapeDtypeStruct((b, n_chunks, 8, 128), jnp.float32),
        grid_spec=grid_spec,
        compiler_params=pltpu.CompilerParams(
            dimension_semantics=("parallel", "parallel", "arbitrary"),
            vmem_limit_bytes=vmem_budget_bytes),
        cost_estimate=cost,
    )(lengths, logits, tgt3d)

    sums = jnp.sum(acc[:, :, :4, 0], axis=(0, 1))   # loss_sum, mask_sum, f, t
    return sums[0] / sums[1], sums[2], sums[3]


def _reference(logits, target, lengths):
    """Pure-JAX reference for verification."""
    b, t, c = logits.shape
    x = logits.reshape(b * t, c).astype(jnp.float32)
    tg = target.reshape(b * t)
    mask = (jnp.arange(t)[None, :] < lengths[:, None]).astype(jnp.float32).reshape(b * t)
    logp = jax.nn.log_softmax(x, axis=-1)
    losses = -jnp.take_along_axis(logp, tg[:, None], axis=1)[:, 0]
    pred = jnp.argmax(x, axis=-1)
    f = jnp.sum((pred != tg).astype(jnp.float32) * mask)
    tt = jnp.sum((pred == tg).astype(jnp.float32) * mask)
    return jnp.sum(losses * mask) / jnp.sum(mask), f, tt


if __name__ == "__main__":
    key = jax.random.PRNGKey(0)

    def check(b, t, c, lens_list, dtype, tol=1e-5, **kwargs):
        kx, kt = jax.random.split(jax.random.fold_in(key, b * 1000 + t * 10 + c))
        logits = jax.random.normal(kx, (b, t, c), dtype=jnp.float32).astype(dtype)
        target = jax.random.randint(kt, (b, t), 0, c, dtype=jnp.int32)
        lengths = jnp.array(lens_list, dtype=jnp.int32)

        loss, f, tt = masked_cross_entropy_loss(logits, target, lengths, **kwargs)
        loss = jax.block_until_ready(loss)
        f = jax.block_until_ready(f)
        tt = jax.block_until_ready(tt)

        ref_loss, ref_f, ref_t = _reference(logits, target, lengths)
        assert jnp.allclose(loss, ref_loss, rtol=tol, atol=tol), (loss, ref_loss)
        assert jnp.allclose(f, ref_f), (f, ref_f)
        assert jnp.allclose(tt, ref_t), (tt, ref_t)

    # batch=2, seq=8, classes=32 (max length == seq, as the module's reshape requires)
    check(2, 8, 32, [8, 5], jnp.float32)
    # multiple time tiles + partial last tile; batch axis is the parallel grid axis
    check(3, 20, 32, [20, 13, 7], jnp.float32, tile_t=8)
    # B=1 exercises the v7x chunk-parallel path (2 chunks, clamped padded tile)
    check(1, 24, 32, [17], jnp.float32, tile_t=8)
    # fast tie-break variant (no duplicated maxima in random float inputs)
    check(2, 16, 64, [16, 9], jnp.float32, tile_t=8, exact_ties=False)
    # native bf16 logits: DMA'd as-is, bf16 elementwise path, f32 accumulation
    check(2, 8, 32, [8, 3], jnp.bfloat16, tol=2e-2)
    # bf16 logits with forced f32 compute (v5e-style), tight tolerance
    check(2, 8, 32, [8, 3], jnp.bfloat16, use_bf16_compute=False)

    print("KERNEL_OK")
</pallas_src>

<mosaic_0001>
module attributes {stable_mosaic.version = 11 : i64} {
  func.func @_masked_ce_kernel(%arg0: i32, %arg1: i32, %arg2: i32, %arg3: memref<2xi32, #tpu.memory_space<smem>>, %arg4: memref<1x8x32xf32, #tpu.memory_space<vmem>>, %arg5: memref<1x8x1xi32, #tpu.memory_space<vmem>>, %arg6: memref<1x1x8x128xf32, #tpu.memory_space<vmem>>, %arg7: memref<8x128xf32, #tpu.memory_space<vmem>>) attributes {dimension_semantics = [#tpu.dimension_semantics<parallel>, #tpu.dimension_semantics<parallel>, #tpu.dimension_semantics<arbitrary>], iteration_bounds = array<i64: 2, 1, 1>, scalar_prefetch = 1 : i64, scratch_operands = 1 : i64, tpu.core_type = #tpu.core_type<tc>, window_params = [{transform_indices = @transform_0, window_bounds = array<i64: 1, 8, 32>}, {transform_indices = @transform_1, window_bounds = array<i64: 1, 8, 1>}, {transform_indices = @transform_2, window_bounds = array<i64: 1, 1, 8, 128>}]} {
    %c0_i32 = arith.constant 0 : i32
    %0 = arith.cmpi eq, %arg2, %c0_i32 : i32
    %1 = arith.extui %0 : i1 to i32
    %c0_i32_0 = arith.constant 0 : i32
    %2 = arith.cmpi ne, %1, %c0_i32_0 : i32
    scf.if %2 {
      %cst_25 = arith.constant 0.000000e+00 : f32
      %93 = vector.broadcast %cst_25 : f32 to vector<8x128xf32>
      %c0_26 = arith.constant 0 : index
      %c0_27 = arith.constant 0 : index
      %94 = vector.load %arg7[%c0_26, %c0_27] : memref<8x128xf32, #tpu.memory_space<vmem>>, vector<8x128xf32>
      tpu.vector_store %arg7[%c0_26, %c0_27], %93 {strides = array<i32>} : memref<8x128xf32, #tpu.memory_space<vmem>>, vector<8x128xf32>,
    } else {
    }
    %c0 = arith.constant 0 : index
    %c0_1 = arith.constant 0 : index
    %c0_2 = arith.constant 0 : index
    %3 = vector.load %arg4[%c0, %c0_1, %c0_2] : memref<1x8x32xf32, #tpu.memory_space<vmem>>, vector<1x8x32xf32>
    %4 = vector.shape_cast %3 : vector<1x8x32xf32> to vector<8x32xf32>
    %c0_3 = arith.constant 0 : index
    %c0_4 = arith.constant 0 : index
    %c0_5 = arith.constant 0 : index
    %5 = vector.load %arg5[%c0_3, %c0_4, %c0_5] : memref<1x8x1xi32, #tpu.memory_space<vmem>>, vector<1x8x1xi32>
    %6 = vector.shape_cast %5 : vector<1x8x1xi32> to vector<8x1xi32>
    %7 = arith.index_cast %arg0 : i32 to index
    %8 = memref.load %arg3[%7] : memref<2xi32, #tpu.memory_space<smem>>
    %c1_i32 = arith.constant 1 : i32
    %9 = arith.muli %arg1, %c1_i32 : i32
    %10 = arith.addi %9, %arg2 : i32
    %11 = tpu.iota {dimensions = array<i32: 0>} : vector<8x1xi32>
    %c8_i32 = arith.constant 8 : i32
    %12 = arith.muli %10, %c8_i32 : i32
    %13 = vector.broadcast %12 : i32 to vector<8x1xi32>
    %14 = arith.addi %13, %11 : vector<8x1xi32>
    %15 = vector.broadcast %8 : i32 to vector<8x1xi32>
    %16 = arith.cmpi slt, %14, %15 : vector<8x1xi32>
    %17 = tpu.iota {dimensions = array<i32: 1>} : vector<8x32xi32>
    %cst = arith.constant dense<0xFF800000> : vector<8xf32>
    %18 = vector.multi_reduction <maximumf>, %4, %cst [1] : vector<8x32xf32> to vector<8xf32>
    %19 = vector.shape_cast %18 : vector<8xf32> to vector<8x1xf32>
    %20 = vector.broadcast %19 : vector<8x1xf32> to vector<8x32xf32>
    %21 = arith.subf %4, %20 : vector<8x32xf32>
    %22 = math.exp %21 : vector<8x32xf32>
    %cst_6 = arith.constant dense<0.000000e+00> : vector<8xf32>
    %23 = vector.multi_reduction <add>, %22, %cst_6 [1] : vector<8x32xf32> to vector<8xf32>
    %24 = vector.shape_cast %23 : vector<8xf32> to vector<8x1xf32>
    %25 = math.log %24 : vector<8x1xf32>
    %26 = arith.addf %19, %25 : vector<8x1xf32>
    %27 = vector.broadcast %6 : vector<8x1xi32> to vector<8x32xi32>
    %28 = arith.cmpi eq, %17, %27 : vector<8x32xi32>
    %cst_7 = arith.constant 0.000000e+00 : f32
    %29 = vector.broadcast %cst_7 : f32 to vector<8x32xf32>
    %30 = arith.select %28, %4, %29 : vector<8x32xi1>, vector<8x32xf32>
    %cst_8 = arith.constant dense<0.000000e+00> : vector<8xf32>
    %31 = vector.multi_reduction <add>, %30, %cst_8 [1] : vector<8x32xf32> to vector<8xf32>
    %32 = vector.shape_cast %31 : vector<8xf32> to vector<8x1xf32>
    %33 = arith.subf %26, %32 : vector<8x1xf32>
    %34 = vector.broadcast %19 : vector<8x1xf32> to vector<8x32xf32>
    %35 = arith.cmpf oeq, %4, %34 : vector<8x32xf32>
    %c32_i32 = arith.constant 32 : i32
    %36 = vector.broadcast %c32_i32 : i32 to vector<8x32xi32>
    %37 = arith.select %35, %17, %36 : vector<8x32xi1>, vector<8x32xi32>
    %cst_9 = arith.constant dense<2147483647> : vector<8xi32>
    %38 = vector.multi_reduction <minsi>, %37, %cst_9 [1] : vector<8x32xi32> to vector<8xi32>
    %39 = vector.shape_cast %38 : vector<8xi32> to vector<8x1xi32>
    %40 = arith.cmpi eq, %39, %6 : vector<8x1xi32>
    %cst_10 = arith.constant 0.000000e+00 : f32
    %41 = vector.broadcast %cst_10 : f32 to vector<8x1xf32>
    %42 = arith.select %16, %33, %41 : vector<8x1xi1>, vector<8x1xf32>
    %43 = vector.shape_cast %42 : vector<8x1xf32> to vector<1x8x1xf32>
    %cst_11 = arith.constant dense<0.000000e+00> : vector<1xf32>
    %44 = vector.multi_reduction <add>, %43, %cst_11 [1, 2] : vector<1x8x1xf32> to vector<1xf32>
    %45 = vector.shape_cast %44 : vector<1xf32> to vector<1x1x1xf32>
    %46 = vector.extract %45[0, 0, 0] : f32 from vector<1x1x1xf32>
    %47 = vector.broadcast %46 : f32 to vector<1x1xf32>
    %48 = arith.extui %16 : vector<8x1xi1> to vector<8x1xi32>
    %49 = arith.sitofp %48 : vector<8x1xi32> to vector<8x1xf32>
    %50 = vector.shape_cast %49 : vector<8x1xf32> to vector<1x8x1xf32>
    %cst_12 = arith.constant dense<0.000000e+00> : vector<1xf32>
    %51 = vector.multi_reduction <add>, %50, %cst_12 [1, 2] : vector<1x8x1xf32> to vector<1xf32>
    %52 = vector.shape_cast %51 : vector<1xf32> to vector<1x1x1xf32>
    %53 = vector.extract %52[0, 0, 0] : f32 from vector<1x1x1xf32>
    %54 = vector.broadcast %53 : f32 to vector<1x1xf32>
    %55 = arith.andi %16, %40 : vector<8x1xi1>
    %cst_13 = arith.constant 1.000000e+00 : f32
    %cst_14 = arith.constant 0.000000e+00 : f32
    %56 = vector.broadcast %cst_13 : f32 to vector<8x1xf32>
    %57 = vector.broadcast %cst_14 : f32 to vector<8x1xf32>
    %58 = arith.select %55, %56, %57 : vector<8x1xi1>, vector<8x1xf32>
    %59 = vector.shape_cast %58 : vector<8x1xf32> to vector<1x8x1xf32>
    %cst_15 = arith.constant dense<0.000000e+00> : vector<1xf32>
    %60 = vector.multi_reduction <add>, %59, %cst_15 [1, 2] : vector<1x8x1xf32> to vector<1xf32>
    %61 = vector.shape_cast %60 : vector<1xf32> to vector<1x1x1xf32>
    %62 = vector.extract %61[0, 0, 0] : f32 from vector<1x1x1xf32>
    %63 = vector.broadcast %62 : f32 to vector<1x1xf32>
    %64 = arith.subf %54, %63 : vector<1x1xf32>
    %65 = tpu.iota {dimensions = array<i32: 0>} : vector<8x128xi32>
    %c0_i32_16 = arith.constant 0 : i32
    %66 = vector.broadcast %c0_i32_16 : i32 to vector<8x128xi32>
    %67 = arith.cmpi eq, %65, %66 : vector<8x128xi32>
    %c1_i32_17 = arith.constant 1 : i32
    %68 = vector.broadcast %c1_i32_17 : i32 to vector<8x128xi32>
    %69 = arith.cmpi eq, %65, %68 : vector<8x128xi32>
    %c2_i32 = arith.constant 2 : i32
    %70 = vector.broadcast %c2_i32 : i32 to vector<8x128xi32>
    %71 = arith.cmpi eq, %65, %70 : vector<8x128xi32>
    %c3_i32 = arith.constant 3 : i32
    %72 = vector.broadcast %c3_i32 : i32 to vector<8x128xi32>
    %73 = arith.cmpi eq, %65, %72 : vector<8x128xi32>
    %cst_18 = arith.constant 0.000000e+00 : f32
    %74 = vector.shape_cast %63 : vector<1x1xf32> to vector<1x1xf32>
    %75 = vector.broadcast %74 : vector<1x1xf32> to vector<8x128xf32>
    %76 = vector.broadcast %cst_18 : f32 to vector<8x128xf32>
    %77 = arith.select %73, %75, %76 : vector<8x128xi1>, vector<8x128xf32>
    %78 = vector.shape_cast %64 : vector<1x1xf32> to vector<1x1xf32>
    %79 = vector.broadcast %78 : vector<1x1xf32> to vector<8x128xf32>
    %80 = arith.select %71, %79, %77 : vector<8x128xi1>, vector<8x128xf32>
    %81 = vector.shape_cast %54 : vector<1x1xf32> to vector<1x1xf32>
    %82 = vector.broadcast %81 : vector<1x1xf32> to vector<8x128xf32>
    %83 = arith.select %69, %82, %80 : vector<8x128xi1>, vector<8x128xf32>
    %84 = vector.shape_cast %47 : vector<1x1xf32> to vector<1x1xf32>
    %85 = vector.broadcast %84 : vector<1x1xf32> to vector<8x128xf32>
    %86 = arith.select %67, %85, %83 : vector<8x128xi1>, vector<8x128xf32>
    %c0_19 = arith.constant 0 : index
    %c0_20 = arith.constant 0 : index
    %87 = vector.load %arg7[%c0_19, %c0_20] : memref<8x128xf32, #tpu.memory_space<vmem>>, vector<8x128xf32>
    %88 = arith.addf %87, %86 : vector<8x128xf32>
    %c0_21 = arith.constant 0 : index
    %c0_22 = arith.constant 0 : index
    %89 = vector.load %arg7[%c0_21, %c0_22] : memref<8x128xf32, #tpu.memory_space<vmem>>, vector<8x128xf32>
    tpu.vector_store %arg7[%c0_21, %c0_22], %88 {strides = array<i32>} : memref<8x128xf32, #tpu.memory_space<vmem>>, vector<8x128xf32>,
    %c0_i32_23 = arith.constant 0 : i32
    %90 = arith.cmpi eq, %arg2, %c0_i32_23 : i32
    %91 = arith.extui %90 : i1 to i32
    %c0_i32_24 = arith.constant 0 : i32
    %92 = arith.cmpi ne, %91, %c0_i32_24 : i32
    scf.if %92 {
      %c0_25 = arith.constant 0 : index
      %c0_26 = arith.constant 0 : index
      %93 = vector.load %arg7[%c0_25, %c0_26] : memref<8x128xf32, #tpu.memory_space<vmem>>, vector<8x128xf32>
      %c0_27 = arith.constant 0 : index
      %c0_28 = arith.constant 0 : index
      %c0_29 = arith.constant 0 : index
      %c0_30 = arith.constant 0 : index
      %94 = vector.load %arg6[%c0_27, %c0_28, %c0_29, %c0_30] : memref<1x1x8x128xf32, #tpu.memory_space<vmem>>, vector<1x1x8x128xf32>
      %95 = vector.shape_cast %94 : vector<1x1x8x128xf32> to vector<8x128xf32>
      %96 = vector.shape_cast %93 : vector<8x128xf32> to vector<1x1x8x128xf32>
      tpu.vector_store %arg6[%c0_27, %c0_28, %c0_29, %c0_30], %96 {strides = array<i32>} : memref<1x1x8x128xf32, #tpu.memory_space<vmem>>, vector<1x1x8x128xf32>,
    } else {
    }
    return
  }
  func.func @transform_0(%arg0: i32, %arg1: i32, %arg2: i32, %arg3: memref<2xi32, #tpu.memory_space<smem>>) -> (i32, i32, i32) {
    %c1_i32 = arith.constant 1 : i32
    %0 = arith.muli %arg1, %c1_i32 : i32
    %1 = arith.addi %0, %arg2 : i32
    %c0_i32 = arith.constant 0 : i32
    %2 = arith.minsi %1, %c0_i32 : i32
    %c0_i32_0 = arith.constant 0 : i32
    %c0_i32_1 = arith.constant 0 : i32
    return %arg0, %2, %c0_i32_0 : i32, i32, i32
  }
  func.func @transform_1(%arg0: i32, %arg1: i32, %arg2: i32, %arg3: memref<2xi32, #tpu.memory_space<smem>>) -> (i32, i32, i32) {
    %c1_i32 = arith.constant 1 : i32
    %0 = arith.muli %arg1, %c1_i32 : i32
    %1 = arith.addi %0, %arg2 : i32
    %c0_i32 = arith.constant 0 : i32
    %2 = arith.minsi %1, %c0_i32 : i32
    %c0_i32_0 = arith.constant 0 : i32
    %c0_i32_1 = arith.constant 0 : i32
    return %arg0, %2, %c0_i32_0 : i32, i32, i32
  }
  func.func @transform_2(%arg0: i32, %arg1: i32, %arg2: i32, %arg3: memref<2xi32, #tpu.memory_space<smem>>) -> (i32, i32, i32, i32) {
    %c0_i32 = arith.constant 0 : i32
    %c0_i32_0 = arith.constant 0 : i32
    %c0_i32_1 = arith.constant 0 : i32
    return %arg0, %arg1, %c0_i32, %c0_i32_0 : i32, i32, i32, i32
  }
}

</mosaic_0001>

<llo_original>
// kernel: masked_cross_entropy_loss.1
$region0: #{masked_cross_entropy_loss.1}
  #allocation0 [shape = 'u32[]', space=smem, size = 0x4, offset = 0x4, fixed_abs, tag = 'smem constant byte address 0x4 - core index']
  #allocation1 [shape = 'u32[144,128]{1,0:T(1,128)}', space=vmem, size = 0x12000, scoped, tag = 'internal scratch']
  #allocation2 [shape = 'f32[8,128]{1,0:T(8,128)}', space=vmem, size = 0x1000, scoped, tag = 'scratch operand']
  #allocation3 [shape = 's32[1]{0}', space=sflag, size = 0x4, scoped, tag = 'scoped memory for masked_cross_entropy_loss.1']
  #allocation4 [shape = 'u8[512]{0}', space=smem, size = 0x200, scoped, tag = 'prefetched SMEM operand 0']
  %s0 = inlined_call_operand.vmem [shape: s32[2], index: 0, kind: input, shape index: {}]
  %s1 = inlined_call_operand.vmem [shape: f32[2,8,32], index: 1, kind: input, shape index: {}]
  %s2 = inlined_call_operand.vmem [shape: s32[2,8,1], index: 2, kind: input, shape index: {}]
  %s3 = inlined_call_operand.vmem [shape: f32[2,1,8,128], index: 3, kind: output, shape index: {}]
  %s4 = sld [smem:[#allocation0]]
  $region49: #{masked_cross_entropy_loss.1} parent=0
    _
  %s6 = ssub.s32 1, %s4
  %s7 = scalar_select 0, %s6, %s4
  %s8 = sshll.u32 %s0, 4
  %s9 = int_to_ptr.vmem [resolvable:$true] %s8
  %11 = dma.vmem_to_smem %s9, 16, [#allocation4], [#allocation3]
  %12 = dma.done [#allocation3], 16
  %13 = sfence
  loop: start=0, step=1, limit=4
  $region2: #{masked_cross_entropy_loss.1} parent=0 // loop_pre_header
    _
  $region3: #{masked_cross_entropy_loss.1} parent=0 // loop_header
    %s15 = sphi 0, %s19
    %p16 = scmp.ge.s32.totalorder %s15, 4
    %s22 = sphi 0, %s41
    %s23 = sphi 0, %s37
    %s24 = sphi 0, %s33
    %s25 = sphi 0, %s22
    %s26 = sphi 0, %s23
    %s27 = sphi 0, %s24
    %s28 = sphi 0, %s25
    %s29 = sphi 0, %s26
    %s30 = sphi 0, %s27
    %s52 = sphi 0, %s54
    %s55 = sphi 0, %s52
    %s56 = sphi 0, %s55
    %s72 = sphi 0, %s56
    %s86 = sphi 0, %s88
    %s89 = sphi 0, %s86
    %s90 = sphi 0, %s89
    %s106 = sphi 0, %s90
    %s114 = sphi 0, %s116
    %s117 = sphi 0, %s114
    %s118 = sphi 0, %s117
    %s134 = sphi 0, %s118
  $region4: #{masked_cross_entropy_loss.1} parent=0 // loop_header_branch
    %18 = sbr.rel (%p16) target = $region8
  $region5: #{masked_cross_entropy_loss.1} parent=0 // loop_body
    %s20 = ssub.s32 %s15, 1
    %s21 = ssub.s32 %s15, 2
    %s31 = sadd.s32 1, %s24
    %p32 = scmp.ge.s32.totalorder %s31, 1
    %s33 = scalar_select %p32, 0, %s31
    %s34 = sadd.s32 1, %s23
    %s35 = scalar_select %p32, %s34, %s23
    %p36 = scmp.ge.s32.totalorder %s35, 1
    %s37 = scalar_select %p36, 0, %s35
    %s38 = sadd.s32 1, %s22
    %s39 = scalar_select %p36, %s38, %s22
    %p40 = scmp.ge.s32.totalorder %s39, 2
    %s41 = scalar_select %p40, 0, %s39
    %s42 = sadd.s32 %s23, %s24
    %p43 = scmp.lt.s32.totalorder %s42, 0
    %s44 = scalar_select %p43, %s42, 0
    %s45 = sadd.s32 %s37, %s33
    %p46 = scmp.lt.s32.totalorder %s45, 0
    %s47 = scalar_select %p46, %s45, 0
    %s48 = ssub.s32 %s22, %s41
    %s49 = ssub.s32 %s44, %s47
    %s50 = sor.u32 %s48, %s49
    %p51 = scmp.eq.s32.totalorder %s50, 0
    %s53 = sadd.s32 %s52, 1
    %s54 = scalar_select %p51, %s52, %s53
    %p57 = pneg %p51
    %p58 = scmp.eq.s32.totalorder %s15, 1
    %p59 = por %p57, %p58
    %p60 = scmp.ne.s32.totalorder %s52, %s55
    %p61 = scmp.eq.s32.totalorder %s15, 0
    %p62 = por %p60, %p61
    %p63 = scmp.ne.s32.totalorder %s52, %s55
    %p64 = scmp.eq.s32.totalorder %s20, 1
    %p65 = por %p63, %p64
    %p66 = scmp.ne.s32.totalorder %s55, %s56
    %p67 = scmp.eq.s32.totalorder %s20, 0
    %p68 = por %p66, %p67
    %p69 = scmp.ne.s32.totalorder %s55, %s56
    %p70 = scmp.eq.s32.totalorder %s21, 1
    %p71 = por %p69, %p70
    %p73 = scmp.ne.s32.totalorder %s56, %s72
    %p74 = scmp.eq.s32.totalorder %s21, 0
    %p75 = por %p73, %p74
    %s76 = sadd.s32 %s23, %s24
    %p77 = scmp.lt.s32.totalorder %s76, 0
    %s78 = scalar_select %p77, %s76, 0
    %s79 = sadd.s32 %s37, %s33
    %p80 = scmp.lt.s32.totalorder %s79, 0
    %s81 = scalar_select %p80, %s79, 0
    %s82 = ssub.s32 %s22, %s41
    %s83 = ssub.s32 %s78, %s81
    %s84 = sor.u32 %s82, %s83
    %p85 = scmp.eq.s32.totalorder %s84, 0
    %s87 = sadd.s32 %s86, 1
    %s88 = scalar_select %p85, %s86, %s87
    %p91 = pneg %p85
    %p92 = scmp.eq.s32.totalorder %s15, 1
    %p93 = por %p91, %p92
    %p94 = scmp.ne.s32.totalorder %s86, %s89
    %p95 = scmp.eq.s32.totalorder %s15, 0
    %p96 = por %p94, %p95
    %p97 = scmp.ne.s32.totalorder %s86, %s89
    %p98 = scmp.eq.s32.totalorder %s20, 1
    %p99 = por %p97, %p98
    %p100 = scmp.ne.s32.totalorder %s89, %s90
    %p101 = scmp.eq.s32.totalorder %s20, 0
    %p102 = por %p100, %p101
    %p103 = scmp.ne.s32.totalorder %s89, %s90
    %p104 = scmp.eq.s32.totalorder %s21, 1
    %p105 = por %p103, %p104
    %p107 = scmp.ne.s32.totalorder %s90, %s106
    %p108 = scmp.eq.s32.totalorder %s21, 0
    %p109 = por %p107, %p108
    %s110 = ssub.s32 %s22, %s41
    %s111 = ssub.s32 %s23, %s37
    %s112 = sor.u32 %s110, %s111
    %p113 = scmp.eq.s32.totalorder %s112, 0
    %s115 = sadd.s32 %s114, 1
    %s116 = scalar_select %p113, %s114, %s115
    %p119 = pneg %p113
    %p120 = scmp.eq.s32.totalorder %s15, 1
    %p121 = por %p119, %p120
    %p122 = scmp.ne.s32.totalorder %s114, %s117
    %p123 = scmp.eq.s32.totalorder %s15, 0
    %p124 = por %p122, %p123
    %p125 = scmp.ne.s32.totalorder %s114, %s117
    %p126 = scmp.eq.s32.totalorder %s20, 1
    %p127 = por %p125, %p126
    %p128 = scmp.ne.s32.totalorder %s117, %s118
    %p129 = scmp.eq.s32.totalorder %s20, 0
    %p130 = por %p128, %p129
    %p131 = scmp.ne.s32.totalorder %s117, %s118
    %p132 = scmp.eq.s32.totalorder %s21, 1
    %p133 = por %p131, %p132
    %p135 = scmp.ne.s32.totalorder %s118, %s134
    %p136 = scmp.eq.s32.totalorder %s21, 0
    %p137 = por %p135, %p136
    %p138 = scmp.le.s32.totalorder 1, %s15
    %p139 = scmp.lt.s32.totalorder %s15, 3
    %p140 = pnand %p138, %p139
    %p141 = pneg %p140
    // Predicated region
    $region9: #{masked_cross_entropy_loss.1} parent=5 // pred_check
      _
    $region10: #{masked_cross_entropy_loss.1} parent=5 // pred_check_branch
      %143 = sbr.rel (%p140) target = $region12
    $region11: #{masked_cross_entropy_loss.1} parent=5 // pred_region
      %s144 = ssub.s32 %s15, 1
    $region12: #{masked_cross_entropy_loss.1} parent=5 // pred_fallthru
      _
    %p145 = scmp.lt.s32.totalorder %s15, 2
    // Predicated region
    $region13: #{masked_cross_entropy_loss.1} parent=5 // pred_check
      %p146 = pneg %p145
    $region14: #{masked_cross_entropy_loss.1} parent=5 // pred_check_branch
      %148 = sbr.rel (%p146) target = $region16
    $region15: #{masked_cross_entropy_loss.1} parent=5 // pred_region
      // Predicated region
      $region17: #{masked_cross_entropy_loss.1} parent=15 // pred_check
        %p149 = pneg %p62
      $region18: #{masked_cross_entropy_loss.1} parent=15 // pred_check_branch
        %151 = sbr.rel (%p149) target = $region20
      $region19: #{masked_cross_entropy_loss.1} parent=15 // pred_region
        %s152 = sadd.s32 %s23, %s24
        %p153 = scmp.lt.s32.totalorder %s152, 0
        %s154 = scalar_select %p153, %s152, 0
        %p155 = scmp.lt.s32.totalorder %s22, 1
        %s156 = scalar_select %p155, %s22, 1
        %p157 = scmp.lt.s32.totalorder %s154, 0
        %s158 = scalar_select %p157, %s154, 0
        %s159 = sadd.s32 %s158, %s156
        %s160 = smul.addr %s159, 8
        %s161 = scalar_lea.vmem %s1, %s160
        %s162 = sadd.s32 %s23, %s24
        %p163 = scmp.lt.s32.totalorder %s162, 0
        %s164 = scalar_select %p163, %s162, 0
      $region20: #{masked_cross_entropy_loss.1} parent=15 // pred_fallthru
        _
      // Predicated region
      $region21: #{masked_cross_entropy_loss.1} parent=15 // pred_check
        %p165 = pneg %p96
      $region22: #{masked_cross_entropy_loss.1} parent=15 // pred_check_branch
        %167 = sbr.rel (%p165) target = $region24
      $region23: #{masked_cross_entropy_loss.1} parent=15 // pred_region
        %s168 = sadd.s32 %s23, %s24
        %p169 = scmp.lt.s32.totalorder %s168, 0
        %s170 = scalar_select %p169, %s168, 0
        %p171 = scmp.lt.s32.totalorder %s22, 1
        %s172 = scalar_select %p171, %s22, 1
        %p173 = scmp.lt.s32.totalorder %s170, 0
        %s174 = scalar_select %p173, %s170, 0
        %s175 = sadd.s32 %s174, %s172
        %s176 = smul.addr %s175, 8
        %s177 = scalar_lea.vmem %s2, %s176
        %s178 = sadd.s32 %s23, %s24
        %p179 = scmp.lt.s32.totalorder %s178, 0
        %s180 = scalar_select %p179, %s178, 0
      $region24: #{masked_cross_entropy_loss.1} parent=15 // pred_fallthru
        _
    $region16: #{masked_cross_entropy_loss.1} parent=5 // pred_fallthru
      _
    %p181 = scmp.le.s32.totalorder 1, %s15
    %p182 = scmp.lt.s32.totalorder %s15, 3
    %p183 = pnand %p181, %p182
    %p184 = pneg %p183
    // Predicated region
    $region25: #{masked_cross_entropy_loss.1} parent=5 // pred_check
      _
    $region26: #{masked_cross_entropy_loss.1} parent=5 // pred_check_branch
      %186 = sbr.rel (%p183) target = $region28
    $region27: #{masked_cross_entropy_loss.1} parent=5 // pred_region
      %s187 = ssub.s32 %s15, 1
      %s188 = sadd.s32 %s26, %s27
      %p189 = scmp.lt.s32.totalorder %s188, 0
      %s190 = scalar_select %p189, %s188, 0
      %p191 = scmp.lt.s32.totalorder %s25, 1
      %s192 = scalar_select %p191, %s25, 1
      %p193 = scmp.lt.s32.totalorder %s190, 0
      %s194 = scalar_select %p193, %s190, 0
      %s195 = sadd.s32 %s194, %s192
      %s196 = smul.addr %s195, 8
      %s197 = scalar_lea.vmem %s1, %s196
      %p198 = pneg %p68
      %p199 = pneg %p65
      %s200 = sadd.s32 %s26, %s27
      %p201 = scmp.lt.s32.totalorder %s200, 0
      %s202 = scalar_select %p201, %s200, 0
      %p203 = scmp.lt.s32.totalorder %s25, 1
      %s204 = scalar_select %p203, %s25, 1
      %p205 = scmp.lt.s32.totalorder %s202, 0
      %s206 = scalar_select %p205, %s202, 0
      %s207 = sadd.s32 %s206, %s204
      %s208 = smul.addr %s207, 8
      %s209 = scalar_lea.vmem %s2, %s208
      %p210 = pneg %p102
      %p211 = pneg %p99
      %p212 = pneg %p130
      %p213 = pneg %p127
      %p214 = scmp.lt.s32.totalorder %s25, 1
      %s215 = scalar_select %p214, %s25, 1
      %p216 = scmp.lt.s32.totalorder %s26, 0
      %s217 = scalar_select %p216, %s26, 0
      %s218 = sadd.s32 %s217, %s215
      %s219 = smul.addr %s218, 8
      %s220 = scalar_lea.vmem %s3, %s219
      %s221 = sadd.s32 %s26, %s27
      %p222 = scmp.lt.s32.totalorder %s221, 0
      %s223 = scalar_select %p222, %s221, 0
      %p224 = scmp.lt.s32.totalorder %s25, 1
      %s225 = scalar_select %p224, %s25, 1
      %p226 = scmp.lt.s32.totalorder %s223, 0
      %s227 = scalar_select %p226, %s223, 0
      %s228 = sadd.s32 %s227, %s225
      %s229 = smul.addr %s228, 8
      %s230 = scalar_lea.vmem %s1, %s229
      %s231 = sadd.s32 %s26, %s27
      %p232 = scmp.lt.s32.totalorder %s231, 0
      %s233 = scalar_select %p232, %s231, 0
      %s234 = sadd.s32 %s26, %s27
      %p235 = scmp.lt.s32.totalorder %s234, 0
      %s236 = scalar_select %p235, %s234, 0
      %p237 = scmp.lt.s32.totalorder %s25, 1
      %s238 = scalar_select %p237, %s25, 1
      %p239 = scmp.lt.s32.totalorder %s236, 0
      %s240 = scalar_select %p239, %s236, 0
      %s241 = sadd.s32 %s240, %s238
      %s242 = smul.addr %s241, 8
      %s243 = scalar_lea.vmem %s2, %s242
      %s244 = sadd.s32 %s26, %s27
      %p245 = scmp.lt.s32.totalorder %s244, 0
      %s246 = scalar_select %p245, %s244, 0
      %p247 = scmp.lt.s32.totalorder %s25, 1
      %s248 = scalar_select %p247, %s25, 1
      %p249 = scmp.lt.s32.totalorder %s26, 0
      %s250 = scalar_select %p249, %s26, 0
      %s251 = sadd.s32 %s250, %s248
      %s252 = smul.addr %s251, 8
      %s253 = scalar_lea.vmem %s3, %s252
      %p254 = scmp.eq.s32.totalorder %s27, 0
      // Predicated region
      $region29: #{masked_cross_entropy_loss.1} parent=27 // pred_check
        %p255 = pneg %p254
      $region30: #{masked_cross_entropy_loss.1} parent=27 // pred_check_branch
        %257 = sbr.rel (%p255) target = $region32
      $region31: #{masked_cross_entropy_loss.1} parent=27 // pred_region
        %258 = vst [vmem:[#allocation2] sm:$0xff] 0.0
      $region32: #{masked_cross_entropy_loss.1} parent=27 // pred_fallthru
        _
      %v259 = vld [vmem:[%s230] sm:$0xff]
      %v260 = vld [vmem:[%s243] sm:$0xff]
      %s261 = sld [smem:[#allocation4 + %s25]]
      %s262 = sadd.s32 %s26, %s27
      %v263 = vlaneseq
      %v264 = vshrl.u32 %v263, 7
      %s265 = smul.u32 %s262, 8
      %v266 = vstv %s265
      %v267 = vadd.s32 %v266, %v264
      %v268 = vstv %s261
      %vm269 = vcmp.lt.s32.totalorder %v267, %v268
      %v270 = vlaneseq
      %v271 = vand.u32 %v270, 127
      %vm272 = vcmask 261120
      %v273 = vsel %vm272, %v259, -inf
      %274 = vmax.xlane.f32.xlu0 %v273
      %v275 = vpop.xlane.xlu0 %274
      %v276 = vsub.f32 %v259, %v275
      %v277 = vmul.f32 %v276, 1.442695
      %v278 = vpow.pop %v277
      %v279 = vsel %vm272, %v278, 0.0
      %280 = vadd.xlane.f32.xlu0 %v279
      %v281 = vpop.xlane.xlu0 %280
      %v282 = vlog2.pop %v281
      %v283 = vmul.f32 %v282, 0.6931472
      %v284 = vadd.f32 %v275, %v283
      %285 = vset.pattern.permute.xlu0 0
      %286 = vperm.xlu0 %285, %v260
      %v287 = vpop.permute.xlu0 %286
      %vm288 = vcmp.eq.s32.totalorder %v271, %v287
      %v289 = vsel %vm288, %v259, 0.0
      %v290 = vsel %vm272, %v289, 0.0
      %291 = vadd.xlane.f32.xlu0 %v290
      %v292 = vpop.xlane.xlu0 %291
      %v293 = vsub.f32 %v284, %v292
      %vm294 = vcmp.eq.f32.partialorder %v259, %v275
      %v295 = vsel %vm294, %v271, 32
      %v296 = vsel %vm272, %v295, 2147483647
      %v297 = vand.u32 %v296, 65535
      %v298 = vshra.s32 %v296, 16
      %v299 = vcvt.s32.f32 %v297
      %v300 = vcvt.s32.f32 %v298
      %301 = vmin.xlane.f32.xlu0 %v300
      %v302 = vpop.xlane.xlu0 %301
      %vm303 = vcmp.eq.f32.partialorder %v300, %v302
      %v304 = vsel %vm303, %v299, inf
      %305 = vmin.xlane.f32.xlu0 %v304
      %v306 = vpop.xlane.xlu0 %305
      %v307 = vcvt.f32.s32 %v306
      %v308 = vcvt.f32.s32 %v302
      %v309 = vshll.u32 %v308, 16
      %v310 = vadd.s32 %v309, %v307
      %vm311 = vcmp.eq.s32.totalorder %v310, %v260
      %v312 = vsel %vm269, %v293, 0.0
      %vm313 = vcmask 7168
      %v314 = vsel %vm313, %v312, 0.0
      %315 = vadd.xlane.f32.xlu0 %v314
      %v316 = vpop.xlane.xlu0 %315
      %v317 = vrot.slane %v316, 4
      %v318 = vadd.f32 %v316, %v317
      %v319 = vrot.slane %v318, 2
      %v320 = vadd.f32 %v318, %v319
      %v321 = vrot.slane %v320, 1
      %v322 = vadd.f32 %v320, %v321
      %s323 = vtos %v322
      %v324 = vsel %vm269, 1, 0
      %v325 = vcvt.s32.f32 %v324
      %v326 = vsel %vm313, %v325, 0.0
      %327 = vadd.xlane.f32.xlu0 %v326
      %v328 = vpop.xlane.xlu0 %327
      %v329 = vrot.slane %v328, 4
      %v330 = vadd.f32 %v328, %v329
      %v331 = vrot.slane %v330, 2
      %v332 = vadd.f32 %v330, %v331
      %v333 = vrot.slane %v332, 1
      %v334 = vadd.f32 %v332, %v333
      %s335 = vtos %v334
      %v336 = vstv %s335
      %vm337 = vmand %vm269, %vm311
      %v338 = vsel %vm337, 1.0, 0.0
      %v339 = vsel %vm313, %v338, 0.0
      %340 = vadd.xlane.f32.xlu0 %v339
      %v341 = vpop.xlane.xlu0 %340
      %v342 = vrot.slane %v341, 4
      %v343 = vadd.f32 %v341, %v342
      %v344 = vrot.slane %v343, 2
      %v345 = vadd.f32 %v343, %v344
      %v346 = vrot.slane %v345, 1
      %v347 = vadd.f32 %v345, %v346
      %s348 = vtos %v347
      %v349 = vstv %s348
      %v350 = vsub.f32 %v336, %v349
      %vm351 = vcmp.eq.s32.totalorder %v264, 0
      %vm352 = vcmp.eq.s32.totalorder %v264, 1
      %vm353 = vcmp.eq.s32.totalorder %v264, 2
      %vm354 = vcmp.eq.s32.totalorder %v264, 3
      %v355 = vsel %vm354, %v349, 0.0
      %v356 = vsel %vm353, %v350, %v355
      %v357 = vsel %vm352, %v336, %v356
      %v358 = vstv %s323
      %v359 = vsel %vm351, %v358, %v357
      %v360 = vld [vmem:[#allocation2] sm:$0xff]
      %v361 = vadd.f32 %v360, %v359
      %362 = vst [vmem:[#allocation2] sm:$0xff] %v361
      // Predicated region
      $region33: #{masked_cross_entropy_loss.1} parent=27 // pred_check
        %p363 = pneg %p254
      $region34: #{masked_cross_entropy_loss.1} parent=27 // pred_check_branch
        %365 = sbr.rel (%p363) target = $region36
      $region35: #{masked_cross_entropy_loss.1} parent=27 // pred_region
        %v366 = vld [vmem:[#allocation2] sm:$0xff]
        %367 = vst [vmem:[%s253] sm:$0xff] %v366
      $region36: #{masked_cross_entropy_loss.1} parent=27 // pred_fallthru
        _
      %p368 = scmp.lt.s32.totalorder %s25, 1
      %s369 = scalar_select %p368, %s25, 1
      %p370 = scmp.lt.s32.totalorder %s26, 0
      %s371 = scalar_select %p370, %s26, 0
      %s372 = sadd.s32 %s371, %s369
      %s373 = smul.addr %s372, 8
      %s374 = scalar_lea.vmem %s3, %s373
      // Predicated region
      $region37: #{masked_cross_entropy_loss.1} parent=27 // pred_check
        %p375 = pneg %p127
      $region38: #{masked_cross_entropy_loss.1} parent=27 // pred_check_branch
        %377 = sbr.rel (%p375) target = $region40
      $region39: #{masked_cross_entropy_loss.1} parent=27 // pred_region
        _
      $region40: #{masked_cross_entropy_loss.1} parent=27 // pred_fallthru
        _
    $region28: #{masked_cross_entropy_loss.1} parent=5 // pred_fallthru
      _
    %p378 = scmp.le.s32.totalorder 2, %s15
    // Predicated region
    $region41: #{masked_cross_entropy_loss.1} parent=5 // pred_check
      %p379 = pneg %p378
    $region42: #{masked_cross_entropy_loss.1} parent=5 // pred_check_branch
      %381 = sbr.rel (%p379) target = $region44
    $region43: #{masked_cross_entropy_loss.1} parent=5 // pred_region
      %s382 = ssub.s32 %s15, 2
      // Predicated region
      $region45: #{masked_cross_entropy_loss.1} parent=43 // pred_check
        %p383 = pneg %p133
      $region46: #{masked_cross_entropy_loss.1} parent=43 // pred_check_branch
        %385 = sbr.rel (%p383) target = $region48
      $region47: #{masked_cross_entropy_loss.1} parent=43 // pred_region
        %p386 = scmp.lt.s32.totalorder %s28, 1
        %s387 = scalar_select %p386, %s28, 1
        %p388 = scmp.lt.s32.totalorder %s29, 0
        %s389 = scalar_select %p388, %s29, 0
        %s390 = sadd.s32 %s389, %s387
        %s391 = smul.addr %s390, 8
        %s392 = scalar_lea.vmem %s3, %s391
      $region48: #{masked_cross_entropy_loss.1} parent=43 // pred_fallthru
        _
    $region44: #{masked_cross_entropy_loss.1} parent=5 // pred_fallthru
      _
  $region6: #{masked_cross_entropy_loss.1} parent=0 // loop_footer
    %s19 = sadd.s32 1, %s15
  $region7: #{masked_cross_entropy_loss.1} parent=0 // loop_footer_branch
    %14 = sbr.rel target = $region3
  $region8: #{masked_cross_entropy_loss.1} parent=0 // loop_exit
    _

</llo_original>
